<compile_context>
chip_gen: v5e
topology: v5e:2x2
jax: 0.10.0
libtpu: 0.0.40
codegen_flags: <defaults>
</compile_context>

<pallas_src>
import jax
import jax.numpy as jnp
from jax.experimental import pallas as pl
from jax.experimental.pallas import tpu as pltpu


def _round_up(v, m):
    return ((v + m - 1) // m) * m


# --------------------------------------------------------------------------
# Path 1: weight-resident fused kernel (small/medium n_class).
# --------------------------------------------------------------------------
def _fused_kernel(x_ref, w_ref, b_ref, o_ref):
    # x_ref: (tb, D) bf16 row tile, w_ref: (D, Np) bf16, b_ref: (1, Np) f32
    logits = jnp.dot(x_ref[...], w_ref[...],
                     preferred_element_type=jnp.float32)          # MXU, f32 acc
    logits = logits + b_ref[...]                                  # f32 bias

    # Numerically stable log_softmax over the last (lane) axis, all in f32.
    m = jnp.max(logits, axis=-1, keepdims=True)                   # XLU reduce
    shifted = logits - m
    lse = jnp.log(jnp.sum(jnp.exp(shifted), axis=-1, keepdims=True))
    o_ref[...] = (shifted - lse).astype(o_ref.dtype)


# --------------------------------------------------------------------------
# Path 2: N-tiled streaming kernel (large n_class).  Two passes over the N
# tiles per row tile: pass 0 accumulates an online logsumexp (m, l scratch),
# pass 1 recomputes the tile logits and writes logits - lse.
# Grid = (row_tiles, 2, n_tiles); reduction axes last, marked "arbitrary".
# --------------------------------------------------------------------------
def _tiled_kernel(x_ref, w_ref, b_ref, o_ref, m_ref, l_ref):
    p = pl.program_id(1)          # 0: accumulate lse, 1: write outputs
    j = pl.program_id(2)          # N-tile index
    nj = pl.num_programs(2)

    logits = jnp.dot(x_ref[...], w_ref[...],
                     preferred_element_type=jnp.float32)          # (tb, tn)
    logits = logits + b_ref[...]

    @pl.when(jnp.logical_and(p == 0, j == 0))
    def _():
        m_ref[...] = jnp.full(m_ref.shape, -jnp.inf, jnp.float32)
        l_ref[...] = jnp.zeros(l_ref.shape, jnp.float32)

    @pl.when(p == 0)
    def _():
        m_prev = m_ref[...]
        m_new = jnp.maximum(m_prev, jnp.max(logits, axis=-1, keepdims=True))
        l_ref[...] = (l_ref[...] * jnp.exp(m_prev - m_new)
                      + jnp.sum(jnp.exp(logits - m_new), axis=-1, keepdims=True))
        m_ref[...] = m_new

    @pl.when(jnp.logical_and(p == 0, j == nj - 1))
    def _():
        # Finalize: m_ref now holds the per-row logsumexp.
        m_ref[...] = m_ref[...] + jnp.log(l_ref[...])

    @pl.when(p == 1)
    def _():
        o_ref[...] = (logits - m_ref[...]).astype(o_ref.dtype)


# --------------------------------------------------------------------------
# Wrapper
# --------------------------------------------------------------------------
def txt_classifier(x, w, b, *, tb=256, tn=512,
                   compute_dtype=jnp.bfloat16, out_dtype=jnp.float32,
                   vmem_budget_bytes=36 * 1024 * 1024):
    """x: (..., D); w: (D, N) (PyTorch weight transposed); b: (N,).

    Returns log_softmax(x @ w + b, axis=-1) with shape (..., N).
    """
    *lead, D = x.shape
    Dw, N = w.shape
    assert Dw == D and b.shape == (N,)

    # Fuse all leading dims into matmul rows (no row padding; Pallas masks the
    # partial last row tile).
    x2 = x.reshape(-1, D)
    R = x2.shape[0]
    tb_eff = min(tb, R)
    nr = pl.cdiv(R, tb_eff)

    csize = jnp.dtype(compute_dtype).itemsize
    osize = jnp.dtype(out_dtype).itemsize

    # Lane-dense class dim (multiple of 128).
    n128 = _round_up(N, 128)

    # Rough VMEM need of the weight-resident path (double-buffered specs).
    fused_vmem = (2 * D * n128 * csize          # weight
                  + 2 * tb_eff * D * csize      # x row tile
                  + 2 * tb_eff * n128 * osize   # out tile
                  + 2 * n128 * 4                # bias
                  + tb_eff * n128 * 4)          # f32 logits temp
    use_fused = fused_vmem <= vmem_budget_bytes

    if use_fused:
        n_pad = n128
        tn_eff = n_pad
    else:
        tn_eff = min(_round_up(tn, 128), n128)
        n_pad = _round_up(N, tn_eff)

    # Pad classes once: zero weight columns, -inf bias (exp(-inf)=0 leaves the
    # logsumexp unchanged; padded log-probs are -inf and sliced off).
    wp, bp = w, b
    if n_pad != N:
        wp = jnp.pad(wp, ((0, 0), (0, n_pad - N)))
        bp = jnp.pad(bp, (0, n_pad - N), constant_values=-jnp.inf)

    xc = x2.astype(compute_dtype)
    wc = wp.astype(compute_dtype)
    b2 = bp.astype(jnp.float32).reshape(1, n_pad)

    cost = pl.CostEstimate(
        flops=2 * R * D * n_pad * (1 if use_fused else 2),
        transcendentals=R * n_pad,
        bytes_accessed=int(xc.size * csize
                           + wc.size * csize * (1 if use_fused else 2 * nr)
                           + b2.size * 4 + R * n_pad * osize),
    )
    cparams = pltpu.CompilerParams(
        dimension_semantics=(("parallel",) if use_fused
                             else ("parallel", "arbitrary", "arbitrary")),
        # v5e's scoped default is only 16 MiB; 48 MiB is below every
        # generation's physical VMEM (64 MiB on v7x) with headroom.
        vmem_limit_bytes=48 * 1024 * 1024,
    )

    if use_fused:
        out = pl.pallas_call(
            _fused_kernel,
            out_shape=jax.ShapeDtypeStruct((R, n_pad), out_dtype),
            grid_spec=pltpu.PrefetchScalarGridSpec(
                num_scalar_prefetch=0,
                grid=(nr,),
                in_specs=[
                    pl.BlockSpec((tb_eff, D), lambda i: (i, 0)),   # x row tile
                    pl.BlockSpec((D, n_pad), lambda i: (0, 0)),    # resident W
                    pl.BlockSpec((1, n_pad), lambda i: (0, 0)),    # resident b
                ],
                out_specs=pl.BlockSpec((tb_eff, n_pad), lambda i: (i, 0)),
            ),
            compiler_params=cparams,
            cost_estimate=cost,
        )(xc, wc, b2)
    else:
        nj = n_pad // tn_eff
        out = pl.pallas_call(
            _tiled_kernel,
            out_shape=jax.ShapeDtypeStruct((R, n_pad), out_dtype),
            grid_spec=pltpu.PrefetchScalarGridSpec(
                num_scalar_prefetch=0,
                grid=(nr, 2, nj),
                in_specs=[
                    pl.BlockSpec((tb_eff, D), lambda i, p, j: (i, 0)),
                    pl.BlockSpec((D, tn_eff), lambda i, p, j: (0, j)),
                    pl.BlockSpec((1, tn_eff), lambda i, p, j: (0, j)),
                ],
                out_specs=pl.BlockSpec((tb_eff, tn_eff), lambda i, p, j: (i, j)),
                scratch_shapes=[
                    pltpu.VMEM((tb_eff, 1), jnp.float32),   # running max / lse
                    pltpu.VMEM((tb_eff, 1), jnp.float32),   # running sum
                ],
            ),
            compiler_params=cparams,
            cost_estimate=cost,
        )(xc, wc, b2)

    out = out[:, :N]
    return out.reshape(*lead, N)


def txt_classifier_ref(x, w, b):
    # Pure-JAX f32 reference.
    return jax.nn.log_softmax(jnp.einsum("...d,dn->...n", x, w) + b, axis=-1)


if __name__ == "__main__":
    # Small shapes consistent with the module: batch=8, d_input=128.
    B, D = 8, 128
    key = jax.random.PRNGKey(0)
    kx, kw, kb = jax.random.split(key, 3)
    x = jax.random.normal(kx, (B, D), dtype=jnp.float32)

    # 1) n_class = 128: weight-resident fused path, lane-dense output.
    N = 128
    w_pt = jax.random.normal(kw, (N, D), dtype=jnp.float32) * 0.05  # torch (n_class, d_input)
    b = jax.random.normal(kb, (N,), dtype=jnp.float32) * 0.05
    out = jax.block_until_ready(txt_classifier(x, w_pt.T, b))
    ref = txt_classifier_ref(x, w_pt.T, b)
    assert out.shape == (B, N)
    assert jnp.allclose(out, ref, atol=3e-2, rtol=3e-2), float(jnp.max(jnp.abs(out - ref)))

    # 2) n_class = 96 (< 128): exercises the -inf class-padding path.
    N2 = 96
    w2 = jax.random.normal(kw, (N2, D), dtype=jnp.float32) * 0.05
    b2 = jax.random.normal(kb, (N2,), dtype=jnp.float32) * 0.05
    out2 = jax.block_until_ready(txt_classifier(x, w2.T, b2))
    ref2 = txt_classifier_ref(x, w2.T, b2)
    assert out2.shape == (B, N2)
    assert jnp.allclose(out2, ref2, atol=3e-2, rtol=3e-2), float(jnp.max(jnp.abs(out2 - ref2)))

    # 3) Force the N-tiled streaming (online-logsumexp) path at a small shape.
    N3 = 256
    w3 = jax.random.normal(kw, (N3, D), dtype=jnp.float32) * 0.05
    b3 = jax.random.normal(kb, (N3,), dtype=jnp.float32) * 0.05
    out3 = jax.block_until_ready(
        txt_classifier(x, w3.T, b3, tn=128, vmem_budget_bytes=0))
    ref3 = txt_classifier_ref(x, w3.T, b3)
    assert out3.shape == (B, N3)
    assert jnp.allclose(out3, ref3, atol=3e-2, rtol=3e-2), float(jnp.max(jnp.abs(out3 - ref3)))

    print("KERNEL_OK")
</pallas_src>

<mosaic_0001>
module attributes {stable_mosaic.version = 11 : i64} {
  func.func @_fused_kernel(%arg0: i32, %arg1: memref<8x128xbf16, #tpu.memory_space<vmem>>, %arg2: memref<128x128xbf16, #tpu.memory_space<vmem>>, %arg3: memref<1x128xf32, #tpu.memory_space<vmem>>, %arg4: memref<8x128xf32, #tpu.memory_space<vmem>>) attributes {dimension_semantics = [#tpu.dimension_semantics<parallel>], iteration_bounds = array<i64: 1>, scalar_prefetch = 0 : i64, scratch_operands = 0 : i64, tpu.core_type = #tpu.core_type<tc>, window_params = [{transform_indices = @transform_0, window_bounds = array<i64: 8, 128>}, {pipeline_mode = #tpu.pipeline_mode<synchronous>, transform_indices = @transform_1, window_bounds = array<i64: 128, 128>}, {pipeline_mode = #tpu.pipeline_mode<synchronous>, transform_indices = @transform_2, window_bounds = array<i64: 1, 128>}, {transform_indices = @transform_3, window_bounds = array<i64: 8, 128>}]} {
    %c0 = arith.constant 0 : index
    %c0_0 = arith.constant 0 : index
    %0 = vector.load %arg1[%c0, %c0_0] : memref<8x128xbf16, #tpu.memory_space<vmem>>, vector<8x128xbf16>
    %c0_1 = arith.constant 0 : index
    %c0_2 = arith.constant 0 : index
    %1 = vector.load %arg2[%c0_1, %c0_2] : memref<128x128xbf16, #tpu.memory_space<vmem>>, vector<128x128xbf16>
    %cst = arith.constant dense<0.000000e+00> : vector<8x128xf32>
    %2 = tpu.matmul %0, %1, %cst {dimension_numbers = #tpu.dot_dimension_numbers<[1], [0], [0], [1], [0, 0, 1, 1], [], []>} : vector<8x128xbf16>, vector<128x128xbf16>, vector<8x128xf32> -> vector<8x128xf32>
    %c0_3 = arith.constant 0 : index
    %c0_4 = arith.constant 0 : index
    %3 = vector.load %arg3[%c0_3, %c0_4] : memref<1x128xf32, #tpu.memory_space<vmem>>, vector<1x128xf32>
    %4 = vector.broadcast %3 : vector<1x128xf32> to vector<8x128xf32>
    %5 = arith.addf %2, %4 : vector<8x128xf32>
    %cst_5 = arith.constant dense<0xFF800000> : vector<8xf32>
    %6 = vector.multi_reduction <maximumf>, %5, %cst_5 [1] : vector<8x128xf32> to vector<8xf32>
    %7 = vector.shape_cast %6 : vector<8xf32> to vector<8x1xf32>
    %8 = vector.broadcast %7 : vector<8x1xf32> to vector<8x128xf32>
    %9 = arith.subf %5, %8 : vector<8x128xf32>
    %10 = math.exp %9 : vector<8x128xf32>
    %cst_6 = arith.constant dense<0.000000e+00> : vector<8xf32>
    %11 = vector.multi_reduction <add>, %10, %cst_6 [1] : vector<8x128xf32> to vector<8xf32>
    %12 = vector.shape_cast %11 : vector<8xf32> to vector<8x1xf32>
    %13 = math.log %12 : vector<8x1xf32>
    %14 = vector.broadcast %13 : vector<8x1xf32> to vector<8x128xf32>
    %15 = arith.subf %9, %14 : vector<8x128xf32>
    %c0_7 = arith.constant 0 : index
    %c0_8 = arith.constant 0 : index
    %16 = vector.load %arg4[%c0_7, %c0_8] : memref<8x128xf32, #tpu.memory_space<vmem>>, vector<8x128xf32>
    tpu.vector_store %arg4[%c0_7, %c0_8], %15 {strides = array<i32>} : memref<8x128xf32, #tpu.memory_space<vmem>>, vector<8x128xf32>,
    return
  }
  func.func @transform_0(%arg0: i32) -> (i32, i32) {
    %c0_i32 = arith.constant 0 : i32
    %c0_i32_0 = arith.constant 0 : i32
    return %arg0, %c0_i32 : i32, i32
  }
  func.func @transform_1(%arg0: i32) -> (i32, i32) {
    %c0_i32 = arith.constant 0 : i32
    %c0_i32_0 = arith.constant 0 : i32
    %c0_i32_1 = arith.constant 0 : i32
    return %c0_i32, %c0_i32_0 : i32, i32
  }
  func.func @transform_2(%arg0: i32) -> (i32, i32) {
    %c0_i32 = arith.constant 0 : i32
    %c0_i32_0 = arith.constant 0 : i32
    %c0_i32_1 = arith.constant 0 : i32
    return %c0_i32, %c0_i32_0 : i32, i32
  }
  func.func @transform_3(%arg0: i32) -> (i32, i32) {
    %c0_i32 = arith.constant 0 : i32
    %c0_i32_0 = arith.constant 0 : i32
    return %arg0, %c0_i32 : i32, i32
  }
}

</mosaic_0001>

<llo_original>
// kernel: tpu_custom_call.1
$region0: #{tpu_custom_call.1}
  #allocation0 [shape = 'u32[]', space=smem, size = 0x4, offset = 0x4, fixed_abs, tag = 'smem constant byte address 0x4 - core index']
  #allocation1 [shape = 'u32[72,128]{1,0:T(1,128)}', space=vmem, size = 0x9000, scoped, tag = 'internal scratch']
  %s0 = inlined_call_operand.hbm [shape: bf16[8,128], index: 0, kind: input, shape index: {}]
  %s1 = inlined_call_operand.hbm [shape: bf16[128,128], index: 1, kind: input, shape index: {}]
  %s2 = inlined_call_operand.vmem [shape: f32[1,128], index: 2, kind: input, shape index: {}]
  %s3 = inlined_call_operand.hbm [shape: f32[8,128], index: 3, kind: output, shape index: {}]
  %s4 = sld [smem:[#allocation0]]
  $region30: #{tpu_custom_call.1} parent=0
    _
  %s6 = ssub.s32 1, %s4
  %s7 = scalar_select 0, %s6, %s4
  $region1: #{tpu_custom_call.1} parent=0
    #allocation2 [shape = 'u8[2048]{0}', space=vmem, size = 0x800, scoped, tag = 'input window, operand 0, single buffered']
    #allocation3 [shape = 's32[1]{0}', space=sflag, size = 0x4, scoped, tag = 'scoped memory for tpu_custom_call.1']
    #allocation4 [shape = 's32[1]{0}', space=sflag, size = 0x4, scoped, tag = 'scoped memory for tpu_custom_call.1']
    #allocation5 [shape = 'u8[32768]{0}', space=vmem, size = 0x8000, scoped, tag = 'input window, operand 1, single buffered']
    #allocation6 [shape = 's32[1]{0}', space=sflag, size = 0x4, scoped, tag = 'scoped memory for tpu_custom_call.1']
    #allocation7 [shape = 'u8[4096]{0}', space=vmem, size = 0x1000, scoped, tag = 'output window, operand 0, single buffered']
    %8 = vsyncpa [#allocation3], 0
    %9 = vsyncpa [#allocation6], 0
    %10 = vsyncpa [#allocation4], 0
    // Predicated region
    $region2: #{tpu_custom_call.1} parent=1 // pred_check
      _
    $region3: #{tpu_custom_call.1} parent=1 // pred_check_branch
      %12 = sbr.rel (0) target = $region5
    $region4: #{tpu_custom_call.1} parent=1 // pred_region
      %14 = vsyncadd [#allocation3], 0
      %s16 = sshll.u32 %s0, 4
      %s17 = int_to_ptr.hbm [resolvable:$true] %s16
      %s18 = sshll.u32 [#allocation2], 4
      %s19 = int_to_ptr.vmem [resolvable:$true] %s18
      %21 = dma.hbm_to_vmem [thread:$0]  %s17, 64, %s19, [#allocation3]
    $region5: #{tpu_custom_call.1} parent=1 // pred_fallthru
      _
    // Predicated region
    $region6: #{tpu_custom_call.1} parent=1 // pred_check
      _
    $region7: #{tpu_custom_call.1} parent=1 // pred_check_branch
      %23 = sbr.rel (0) target = $region9
    $region8: #{tpu_custom_call.1} parent=1 // pred_region
      %25 = vsyncadd [#allocation6], 0
      %s26 = sshll.u32 %s1, 4
      %s27 = int_to_ptr.hbm [resolvable:$true] %s26
      %s28 = sshll.u32 [#allocation5], 4
      %s29 = int_to_ptr.vmem [resolvable:$true] %s28
      %34 = dma.hbm_to_vmem [thread:$0]  %s27, 1024, %s29, [#allocation6], 64, 64, 4
    $region9: #{tpu_custom_call.1} parent=1 // pred_fallthru
      _
    // Predicated region
    $region10: #{tpu_custom_call.1} parent=1 // pred_check
      _
    $region11: #{tpu_custom_call.1} parent=1 // pred_check_branch
      %36 = sbr.rel (0) target = $region13
    $region12: #{tpu_custom_call.1} parent=1 // pred_region
      _
    $region13: #{tpu_custom_call.1} parent=1 // pred_fallthru
      _
    // Predicated region
    $region14: #{tpu_custom_call.1} parent=1 // pred_check
      _
    $region15: #{tpu_custom_call.1} parent=1 // pred_check_branch
      %38 = sbr.rel (0) target = $region17
    $region16: #{tpu_custom_call.1} parent=1 // pred_region
      %40 = dma.done [#allocation3], 64
    $region17: #{tpu_custom_call.1} parent=1 // pred_fallthru
      _
    // Predicated region
    $region18: #{tpu_custom_call.1} parent=1 // pred_check
      _
    $region19: #{tpu_custom_call.1} parent=1 // pred_check_branch
      %42 = sbr.rel (0) target = $region21
    $region20: #{tpu_custom_call.1} parent=1 // pred_region
      %44 = dma.done [#allocation6], 1024
    $region21: #{tpu_custom_call.1} parent=1 // pred_fallthru
      _
    %v45 = vld [vmem:[#allocation2] sm:$0xf]
    %v46 = vld [vmem:[#allocation5] sm:$0xf]
    %v47 = vld [vmem:[#allocation5 + $0x4] sm:$0xf]
    %v48 = vld [vmem:[#allocation5 + $0x8] sm:$0xf]
    %v49 = vld [vmem:[#allocation5 + $0xc] sm:$0xf]
    %v50 = vld [vmem:[#allocation5 + $0x10] sm:$0xf]
    %v51 = vld [vmem:[#allocation5 + $0x14] sm:$0xf]
    %v52 = vld [vmem:[#allocation5 + $0x18] sm:$0xf]
    %v53 = vld [vmem:[#allocation5 + $0x1c] sm:$0xf]
    %v54 = vld [vmem:[#allocation5 + $0x20] sm:$0xf]
    %v55 = vld [vmem:[#allocation5 + $0x24] sm:$0xf]
    %v56 = vld [vmem:[#allocation5 + $0x28] sm:$0xf]
    %v57 = vld [vmem:[#allocation5 + $0x2c] sm:$0xf]
    %v58 = vld [vmem:[#allocation5 + $0x30] sm:$0xf]
    %v59 = vld [vmem:[#allocation5 + $0x34] sm:$0xf]
    %v60 = vld [vmem:[#allocation5 + $0x38] sm:$0xf]
    %v61 = vld [vmem:[#allocation5 + $0x3c] sm:$0xf]
    %v62 = vld [vmem:[%s2] sm:$0x1]
    %v64 = vperm.slane %v62, 0
    %v82 = vunpack.c.l.b16 %v46
    %v83 = vunpack.c.l.b16 %v47
    %v84 = vunpack.c.l.b16 %v48
    %v85 = vunpack.c.l.b16 %v49
    %v86 = vunpack.c.l.b16 %v50
    %v87 = vunpack.c.l.b16 %v51
    %v88 = vunpack.c.l.b16 %v52
    %v89 = vunpack.c.l.b16 %v53
    %v90 = vunpack.c.l.b16 %v54
    %v91 = vunpack.c.l.b16 %v55
    %v92 = vunpack.c.l.b16 %v56
    %v93 = vunpack.c.l.b16 %v57
    %v94 = vunpack.c.l.b16 %v58
    %v95 = vunpack.c.l.b16 %v59
    %v96 = vunpack.c.l.b16 %v60
    %v97 = vunpack.c.l.b16 %v61
    %v98 = vpack.c.b16 %v83, %v82
    %v99 = vpack.c.b16 %v85, %v84
    %v100 = vpack.c.b16 %v87, %v86
    %v101 = vpack.c.b16 %v89, %v88
    %v102 = vpack.c.b16 %v91, %v90
    %v103 = vpack.c.b16 %v93, %v92
    %v104 = vpack.c.b16 %v95, %v94
    %v105 = vpack.c.b16 %v97, %v96
    %114 = vmatpush.bf16.msra.mxu0 %v105
    %115 = vmatpush.bf16.msra.mxu0 %v104
    %116 = vmatpush.bf16.msra.mxu0 %v103
    %117 = vmatpush.bf16.msra.mxu0 %v102
    %118 = vmatpush.bf16.msra.mxu0 %v101
    %119 = vmatpush.bf16.msra.mxu0 %v100
    %120 = vmatpush.bf16.msra.mxu0 %v99
    %121 = vmatpush.bf16.msra.mxu0 %v98
    %122 = vmatmul.bf16.gmra.mxu0 %v45
    %v123 = vpop.f32.mrf.mxu0
    %v124 = vadd.f32 %v64, %v123
    %v125 = vpop.f32.mrf.mxu0
    %126 = vdwg.mxu0
    %127 = vmax.xlane.f32.xlu0 %v124
    %v128 = vpop.xlane.xlu0 %127
    %v129 = vsub.f32 %v124, %v128
    %v130 = vmul.f32 %v129, 1.442695
    %v131 = vpow.pop %v130
    %132 = vadd.xlane.f32.xlu0 %v131
    %v133 = vpop.xlane.xlu0 %132
    %v134 = vlog2.pop %v133
    %v135 = vmul.f32 %v134, 0.6931472
    %v136 = vsub.f32 %v129, %v135
    %137 = vst [vmem:[#allocation7] sm:$0xff] %v136
    // Predicated region
    $region22: #{tpu_custom_call.1} parent=1 // pred_check
      _
    $region23: #{tpu_custom_call.1} parent=1 // pred_check_branch
      %139 = sbr.rel (0) target = $region25
    $region24: #{tpu_custom_call.1} parent=1 // pred_region
      %141 = vsyncadd [#allocation4], 0
      %s143 = sshll.u32 [#allocation7], 4
      %s144 = int_to_ptr.vmem [resolvable:$true] %s143
      %s145 = sshll.u32 %s3, 4
      %s146 = int_to_ptr.hbm [resolvable:$true] %s145
      %148 = dma.vmem_to_hbm [thread:$0]  %s144, 128, %s146, [#allocation4]
    $region25: #{tpu_custom_call.1} parent=1 // pred_fallthru
      _
    // Predicated region
    $region26: #{tpu_custom_call.1} parent=1 // pred_check
      _
    $region27: #{tpu_custom_call.1} parent=1 // pred_check_branch
      %150 = sbr.rel (0) target = $region29
    $region28: #{tpu_custom_call.1} parent=1 // pred_region
      %152 = dma.done [#allocation4], 128
    $region29: #{tpu_custom_call.1} parent=1 // pred_fallthru
      _
    %153 = vsyncpa [#allocation3], 1
    %154 = vsyncpa [#allocation6], 1
    %155 = vsyncpa [#allocation4], 1

</llo_original>
